<compile_context>
chip_gen: v7x
topology: tpu7x:2x2x1
jax: 0.10.0
libtpu: 0.0.40
codegen_flags: <defaults>
</compile_context>

<pallas_src>
import math
import jax
import jax.numpy as jnp
from jax.experimental import pallas as pl
from jax.experimental.pallas import tpu as pltpu

_MIB = 1024 * 1024
_RESIDENT_BUDGET = 40 * _MIB      # keep W_eff VMEM-resident only if this fits
_VMEM_CAP = 48 * _MIB             # leave headroom on v7x's 64 MiB VMEM


# ----------------------------------------------------------------------------- utils
def _round_up(x, m):
    return ((x + m - 1) // m) * m


def _pick_tile(dim, candidates):
    for c in candidates:
        if c <= dim and dim % c == 0:
            return c
    return dim


def _im2col(x, kh, kw, stride, padding, dilation):
    """x: (B, C, H, W) -> patches (B*oh*ow, C*kh*kw), feature order (c, i, j) so it
    matches W.reshape(O, C*kh*kw).  Runs in x.dtype (call with bf16 to halve traffic)."""
    sh, sw = stride
    ph, pw = padding
    dh, dw = dilation
    B, C, H, W = x.shape
    if (sh, sw) == (kh, kw) and (ph, pw) == (0, 0) and (dh, dw) == (1, 1) \
            and H % kh == 0 and W % kw == 0:
        # ViT patch-embedding fast path: single reshape + transpose, no slice/stack loop.
        oh, ow = H // kh, W // kw
        p = x.reshape(B, C, oh, kh, ow, kw).transpose(0, 2, 4, 1, 3, 5)
        return p.reshape(B * oh * ow, C * kh * kw), oh, ow
    xp = jnp.pad(x, ((0, 0), (0, 0), (ph, ph), (pw, pw)))
    Hp, Wp = H + 2 * ph, W + 2 * pw
    oh = (Hp - dh * (kh - 1) - 1) // sh + 1
    ow = (Wp - dw * (kw - 1) - 1) // sw + 1
    cols = []
    for i in range(kh):
        for j in range(kw):
            r0, c0 = i * dh, j * dw
            patch = jax.lax.slice(
                xp, (0, 0, r0, c0),
                (B, C, r0 + (oh - 1) * sh + 1, c0 + (ow - 1) * sw + 1),
                (1, 1, sh, sw))                      # (B, C, oh, ow)
            cols.append(patch)
    patches = jnp.stack(cols, axis=2)                # (B, C, kh*kw, oh, ow)
    patches = patches.reshape(B, C * kh * kw, oh, ow)
    patches = patches.transpose(0, 2, 3, 1).reshape(B * oh * ow, C * kh * kw)
    return patches, oh, ow


# ----------------------------------------------------------------------------- kernels
def weff_kernel(scale_ref, b2_ref, a2_ref, w_ref, weff_ref):
    # scale_ref : SMEM (1,)          f32
    # b2_ref    : VMEM (to, khrk_p)  bf16   lora_B.reshape(O, kh*rk) rows (zero-padded)
    # a2_ref    : VMEM (khrk_p, K)   bf16   kron(I_kh, lora_A) (resident across grid)
    # w_ref     : VMEM (to, K)       f32    module weight rows in the (O, K) view
    # weff_ref  : VMEM (to, K)       bf16   W_eff rows (f32 math, bf16 on store)
    delta = jnp.dot(b2_ref[...], a2_ref[...], preferred_element_type=jnp.float32)
    weff_ref[...] = (w_ref[...] + scale_ref[0] * delta).astype(weff_ref.dtype)


def linear_resident_kernel(x_ref, w_ref, b_ref, o_ref):
    # x_ref : VMEM (tn, K) bf16 ; w_ref : VMEM (O_pad, K) bf16 (resident, fetched once)
    # b_ref : VMEM (1, O_pad) f32 (resident) ; o_ref : VMEM (tn, O_pad) bf16
    acc = jax.lax.dot_general(
        x_ref[...], w_ref[...],
        dimension_numbers=(((1,), (1,)), ((), ())),
        preferred_element_type=jnp.float32)
    o_ref[...] = (acc + b_ref[...]).astype(o_ref.dtype)


def linear_tiled_kernel(x_ref, w_ref, b_ref, o_ref, acc_ref):
    # x_ref : VMEM (tn, tk) bf16 ; w_ref : VMEM (tm, tk) bf16 ; b_ref : VMEM (1, tm) f32
    # o_ref : VMEM (tn, tm) bf16 ; acc_ref : VMEM (tn, tm) f32 scratch accumulator
    @pl.when(pl.program_id(2) == 0)
    def _():
        acc_ref[...] = jnp.zeros_like(acc_ref)

    acc_ref[...] += jax.lax.dot_general(
        x_ref[...], w_ref[...],
        dimension_numbers=(((1,), (1,)), ((), ())),
        preferred_element_type=jnp.float32)

    @pl.when(pl.program_id(2) == pl.num_programs(2) - 1)
    def _():
        o_ref[...] = (acc_ref[...] + b_ref[...]).astype(o_ref.dtype)


# ----------------------------------------------------------------------------- kernel A wrapper
def _compute_w_eff(module_weight, lora_A, lora_B, scale, O_pad):
    """W_eff emitted directly in the (O_pad, C*kh*kw) layout used by the matmul."""
    O, C, kh, kw = module_weight.shape
    Ok, rk = lora_B.shape
    Ck = lora_A.shape[1]
    K = C * kh * kw
    assert Ok == O * kh and Ck == C * kw and Ok * Ck == O * K

    # Row-major identity: (B @ A).reshape(O, K) == B.reshape(O, kh*rk) @ kron(I_kh, A).
    # This lets the kernel produce the (O, K) layout with one plain matmul (lane-dense
    # stores, no in-kernel reshape) and matches torch's .view() exactly (flat add).
    khrk = kh * rk
    khrk_p = _round_up(khrk, 16)
    b2 = jnp.zeros((O_pad, khrk_p), jnp.bfloat16)
    b2 = b2.at[:O, :khrk].set(lora_B.reshape(O, khrk).astype(jnp.bfloat16))
    a2_full = jnp.kron(jnp.eye(kh, dtype=jnp.float32), lora_A.astype(jnp.float32))  # (khrk, K)
    a2 = jnp.zeros((khrk_p, K), jnp.bfloat16).at[:khrk].set(a2_full.astype(jnp.bfloat16))

    w2d = jnp.zeros((O_pad, K), jnp.float32)
    w2d = w2d.at[:O].set(module_weight.reshape(O, K).astype(jnp.float32))

    scale_arr = jnp.asarray(scale, jnp.float32).reshape(1)

    to = _pick_tile(O_pad, (512, 256, 128))          # O_pad is a multiple of 128
    return pl.pallas_call(
        weff_kernel,
        out_shape=jax.ShapeDtypeStruct((O_pad, K), jnp.bfloat16),
        grid=(O_pad // to,),
        in_specs=[
            pl.BlockSpec(memory_space=pltpu.MemorySpace.SMEM),   # scale (scalar)
            pl.BlockSpec((to, khrk_p), lambda i: (i, 0)),        # lora_B rows (O-major)
            pl.BlockSpec((khrk_p, K), lambda i: (0, 0)),         # expanded lora_A (resident)
            pl.BlockSpec((to, K), lambda i: (i, 0)),             # W rows, (O, K) view
        ],
        out_specs=pl.BlockSpec((to, K), lambda i: (i, 0)),
        compiler_params=pltpu.CompilerParams(dimension_semantics=("parallel",)),
    )(scale_arr, b2, a2, w2d)


# ----------------------------------------------------------------------------- forward
def conv2d_lora_forward(x, module_weight, module_bias, lora_A, lora_B, scale,
                        stride, padding, dilation, groups=1,
                        out_dtype=jnp.bfloat16, force_tiled=False):
    if groups != 1:
        # TODO(synk): grouped conv2d (groups > 1) has no clean im2col+single-matmul mapping.
        raise NotImplementedError("groups > 1 not supported")

    O, C, kh, kw = module_weight.shape
    K = C * kh * kw
    B = x.shape[0]

    O_pad = _round_up(O, 128)        # lane-dense output columns / MXU alignment
    w_eff = _compute_w_eff(module_weight, lora_A, lora_B, scale, O_pad)   # (O_pad, K) bf16

    bias2 = jnp.zeros((1, O_pad), jnp.float32)
    if module_bias is not None:
        bias2 = bias2.at[0, :O].set(module_bias.astype(jnp.float32))

    # im2col in bf16: pure data movement, half the HBM traffic of doing it in f32.
    patches, oh, ow = _im2col(x.astype(jnp.bfloat16), kh, kw, stride, padding, dilation)
    N = patches.shape[0]

    # Pad N up to the tile so realistic token counts (e.g. 392, 1568) never fall back
    # to 8-32 row tiles; padded rows are zeros and are sliced off afterwards.
    tn = min(256, _round_up(N, 16))
    N_pad = _round_up(N, tn)
    if N_pad != N:
        patches = jnp.zeros((N_pad, K), jnp.bfloat16).at[:N].set(patches)

    # ---- Kernel B: out = patches @ W_eff^T + bias ----
    resident_bytes = (2 * O_pad * K * 2        # W_eff (double-buffered, DMA'd once)
                      + 2 * tn * K * 2         # patch tiles (double-buffered)
                      + 2 * tn * O_pad * 2     # bf16 output tiles
                      + 2 * O_pad * 4)         # bias
    use_resident = (not force_tiled) and (resident_bytes <= _RESIDENT_BUDGET)

    if use_resident:
        vmem_limit = int(min(_VMEM_CAP, max(32 * _MIB, 1.5 * resident_bytes)))
        out2d = pl.pallas_call(
            linear_resident_kernel,
            out_shape=jax.ShapeDtypeStruct((N_pad, O_pad), jnp.bfloat16),
            grid_spec=pltpu.PrefetchScalarGridSpec(
                num_scalar_prefetch=0,
                grid=(N_pad // tn,),
                in_specs=[
                    pl.BlockSpec((tn, K), lambda i: (i, 0)),       # patches
                    pl.BlockSpec((O_pad, K), lambda i: (0, 0)),    # W_eff: constant index
                    pl.BlockSpec((1, O_pad), lambda i: (0, 0)),    # bias:  constant index
                ],
                out_specs=pl.BlockSpec((tn, O_pad), lambda i: (i, 0)),
            ),
            compiler_params=pltpu.CompilerParams(
                dimension_semantics=("parallel",),
                vmem_limit_bytes=vmem_limit),
        )(patches, w_eff, bias2)
    else:
        # Fallback: weights too large to keep resident -> 3-axis tiled matmul,
        # reduction axis last, f32 VMEM accumulator, bf16 output in the epilogue.
        tm = 256 if (O_pad % 256 == 0 and O_pad >= 256) else 128
        if K <= 2048:
            tk, K_pad = K, K
        else:
            tk = 512
            K_pad = _round_up(K, tk)

        def _tile_bytes(tk_):
            return (2 * (tn + tm) * tk_ * 2 + 2 * tn * tm * 2
                    + tn * tm * 4 + 2 * tm * 4)

        # VMEM guard (sized for v7x's 64 MiB per-core VMEM).
        while _tile_bytes(tk) > 36 * _MIB and tk > 256:
            tk = max(256, tk // 2)
            K_pad = _round_up(K, tk)
        if K_pad != K:
            patches = jnp.zeros((N_pad, K_pad), jnp.bfloat16).at[:, :K].set(patches)
            w_eff = jnp.zeros((O_pad, K_pad), jnp.bfloat16).at[:, :K].set(w_eff)

        vmem_limit = int(min(_VMEM_CAP, max(32 * _MIB, 1.5 * _tile_bytes(tk))))
        out2d = pl.pallas_call(
            linear_tiled_kernel,
            out_shape=jax.ShapeDtypeStruct((N_pad, O_pad), jnp.bfloat16),
            grid_spec=pltpu.PrefetchScalarGridSpec(
                num_scalar_prefetch=0,
                grid=(N_pad // tn, O_pad // tm, K_pad // tk),
                in_specs=[
                    pl.BlockSpec((tn, tk), lambda i, j, k: (i, k)),   # patches
                    pl.BlockSpec((tm, tk), lambda i, j, k: (j, k)),   # W_eff
                    pl.BlockSpec((1, tm), lambda i, j, k: (0, j)),    # bias
                ],
                out_specs=pl.BlockSpec((tn, tm), lambda i, j, k: (i, j)),
                scratch_shapes=[pltpu.VMEM((tn, tm), jnp.float32)],
            ),
            compiler_params=pltpu.CompilerParams(
                dimension_semantics=("parallel", "parallel", "arbitrary"),
                vmem_limit_bytes=vmem_limit),
        )(patches, w_eff, bias2)

    if N_pad != N or O_pad != O:
        out2d = out2d[:N, :O]
    # NHWC -> NCHW relayout kept to match nn.Conv2d output layout.
    # TODO(synk): skip this transpose (keep NHWC) when the downstream consumer allows it.
    out = out2d.reshape(B, oh, ow, O).transpose(0, 3, 1, 2)
    return out.astype(out_dtype)


# ----------------------------------------------------------------------------- references
def conv2d_lora_reference(x, module_weight, module_bias, lora_A, lora_B, scale,
                          stride, padding, dilation):
    delta = (scale * (lora_B @ lora_A)).reshape(module_weight.shape)
    w_eff = module_weight + delta
    out = jax.lax.conv_general_dilated(
        x, w_eff, window_strides=stride,
        padding=[(padding[0], padding[0]), (padding[1], padding[1])],
        rhs_dilation=dilation,
        dimension_numbers=("NCHW", "OIHW", "NCHW"))
    return out + module_bias.reshape(1, -1, 1, 1)


def conv2d_lora_reference_bf16(x, module_weight, module_bias, lora_A, lora_B, scale,
                               stride, padding, dilation):
    # Mirrors the kernel's roundings: bf16 lora factors, bf16 W_eff, bf16 patches,
    # f32 accumulation, bf16 output.
    O, C, kh, kw = module_weight.shape
    a_bf = lora_A.astype(jnp.bfloat16).astype(jnp.float32)
    b_bf = lora_B.astype(jnp.bfloat16).astype(jnp.float32)
    w2d = module_weight.reshape(O * kh, C * kw).astype(jnp.float32)
    w_eff = (w2d + scale * (b_bf @ a_bf)).astype(jnp.bfloat16).astype(jnp.float32)
    w_eff = w_eff.reshape(O, C * kh * kw)
    patches, oh, ow = _im2col(x.astype(jnp.bfloat16), kh, kw, stride, padding, dilation)
    p_bf = patches.astype(jnp.float32)
    out2d = p_bf @ w_eff.T + module_bias.reshape(1, O).astype(jnp.float32)
    out2d = out2d.astype(jnp.bfloat16).astype(jnp.float32)
    return out2d.reshape(x.shape[0], oh, ow, O).transpose(0, 3, 1, 2)


# ----------------------------------------------------------------------------- main
if __name__ == "__main__":
    # ViT patch-embedding style Conv2d: stride == kernel_size, no padding.
    Bsz, Cin, H, W = 2, 4, 16, 16
    Cout, ksz, rank = 32, 4, 5
    stride, padding, dilation = (4, 4), (0, 0), (1, 1)

    key = jax.random.PRNGKey(0)
    k1, k2, k3, k4, k5 = jax.random.split(key, 5)

    # lora_A: kaiming_uniform_(a=sqrt(5)) on (rank*k, Cin*k) -> bound = 1/sqrt(fan_in)
    bound_a = 1.0 / math.sqrt(Cin * ksz)
    lora_A = jax.random.uniform(k1, (rank * ksz, Cin * ksz), jnp.float32, -bound_a, bound_a)
    # reset_parameters() zeroes lora_B; use small non-zero values so the LoRA branch
    # actually contributes in this synthetic test.
    lora_B = jax.random.uniform(k2, (Cout * ksz, rank * ksz), jnp.float32, -0.1, 0.1)
    # Scaler(scale=None) -> learnable scalar (init 1.0); use a non-trivial value here.
    scale = jnp.float32(0.8)

    # Wrapped nn.Conv2d weight/bias (torch default init bounds).
    w_bound = 1.0 / math.sqrt(Cin * ksz * ksz)
    module_weight = jax.random.uniform(k3, (Cout, Cin, ksz, ksz), jnp.float32, -w_bound, w_bound)
    module_bias = jax.random.uniform(k4, (Cout,), jnp.float32, -w_bound, w_bound)

    x = jax.random.normal(k5, (Bsz, Cin, H, W), jnp.float32)

    out = conv2d_lora_forward(x, module_weight, module_bias, lora_A, lora_B, scale,
                              stride, padding, dilation)
    out = jax.block_until_ready(out)

    oh = (H + 2 * padding[0] - dilation[0] * (ksz - 1) - 1) // stride[0] + 1
    ow = (W + 2 * padding[1] - dilation[1] * (ksz - 1) - 1) // stride[1] + 1
    assert out.shape == (Bsz, Cout, oh, ow), out.shape

    ref_bf = conv2d_lora_reference_bf16(x, module_weight, module_bias, lora_A, lora_B,
                                        scale, stride, padding, dilation)
    ref_f32 = conv2d_lora_reference(x, module_weight, module_bias, lora_A, lora_B,
                                    scale, stride, padding, dilation)
    out_f32 = out.astype(jnp.float32)
    assert jnp.allclose(out_f32, ref_bf, atol=2e-2, rtol=2e-2), (
        float(jnp.max(jnp.abs(out_f32 - ref_bf))))
    assert jnp.allclose(out_f32, ref_f32, atol=8e-2, rtol=8e-2), (
        float(jnp.max(jnp.abs(out_f32 - ref_f32))))

    # Also exercise the tiled (non-resident weight) fallback path once.
    out_t = conv2d_lora_forward(x, module_weight, module_bias, lora_A, lora_B, scale,
                                stride, padding, dilation, force_tiled=True)
    out_t = jax.block_until_ready(out_t).astype(jnp.float32)
    assert out_t.shape == (Bsz, Cout, oh, ow), out_t.shape
    assert jnp.allclose(out_t, ref_bf, atol=2e-2, rtol=2e-2), (
        float(jnp.max(jnp.abs(out_t - ref_bf))))

    print("KERNEL_OK")
</pallas_src>

<mosaic_0001>
module attributes {stable_mosaic.version = 11 : i64} {
  func.func @weff_kernel(%arg0: i32, %arg1: memref<1xf32, #tpu.memory_space<smem>>, %arg2: memref<128x80xbf16, #tpu.memory_space<vmem>>, %arg3: memref<80x64xbf16, #tpu.memory_space<vmem>>, %arg4: memref<128x64xf32, #tpu.memory_space<vmem>>, %arg5: memref<128x64xbf16, #tpu.memory_space<vmem>>) attributes {dimension_semantics = [#tpu.dimension_semantics<parallel>], iteration_bounds = array<i64: 1>, scalar_prefetch = 0 : i64, scratch_operands = 0 : i64, tpu.core_type = #tpu.core_type<tc>, window_params = [{transform_indices = @transform_0, window_bounds = array<i64: 1>}, {transform_indices = @transform_1, window_bounds = array<i64: 128, 80>}, {pipeline_mode = #tpu.pipeline_mode<synchronous>, transform_indices = @transform_2, window_bounds = array<i64: 80, 64>}, {transform_indices = @transform_3, window_bounds = array<i64: 128, 64>}, {transform_indices = @transform_4, window_bounds = array<i64: 128, 64>}]} {
    %c0 = arith.constant 0 : index
    %c0_0 = arith.constant 0 : index
    %0 = vector.load %arg2[%c0, %c0_0] : memref<128x80xbf16, #tpu.memory_space<vmem>>, vector<128x80xbf16>
    %c0_1 = arith.constant 0 : index
    %c0_2 = arith.constant 0 : index
    %1 = vector.load %arg3[%c0_1, %c0_2] : memref<80x64xbf16, #tpu.memory_space<vmem>>, vector<80x64xbf16>
    %cst = arith.constant dense<0.000000e+00> : vector<128x64xf32>
    %2 = tpu.matmul %0, %1, %cst {dimension_numbers = #tpu.dot_dimension_numbers<[1], [0], [0], [1], [0, 0, 1, 1], [], []>} : vector<128x80xbf16>, vector<80x64xbf16>, vector<128x64xf32> -> vector<128x64xf32>
    %c0_3 = arith.constant 0 : index
    %c0_4 = arith.constant 0 : index
    %3 = vector.load %arg4[%c0_3, %c0_4] : memref<128x64xf32, #tpu.memory_space<vmem>>, vector<128x64xf32>
    %c0_5 = arith.constant 0 : index
    %4 = memref.load %arg1[%c0_5] : memref<1xf32, #tpu.memory_space<smem>>
    %5 = vector.broadcast %4 : f32 to vector<128x64xf32>
    %6 = arith.mulf %5, %2 : vector<128x64xf32>
    %7 = arith.addf %3, %6 : vector<128x64xf32>
    %8 = arith.truncf %7 : vector<128x64xf32> to vector<128x64xbf16>
    %c0_6 = arith.constant 0 : index
    %c0_7 = arith.constant 0 : index
    %9 = vector.load %arg5[%c0_6, %c0_7] : memref<128x64xbf16, #tpu.memory_space<vmem>>, vector<128x64xbf16>
    tpu.vector_store %arg5[%c0_6, %c0_7], %8 {strides = array<i32>} : memref<128x64xbf16, #tpu.memory_space<vmem>>, vector<128x64xbf16>,
    return
  }
  func.func @transform_0(%arg0: i32) -> i32 {
    %c0_i32 = arith.constant 0 : i32
    %c0_i32_0 = arith.constant 0 : i32
    return %c0_i32 : i32
  }
  func.func @transform_1(%arg0: i32) -> (i32, i32) {
    %c0_i32 = arith.constant 0 : i32
    %c0_i32_0 = arith.constant 0 : i32
    return %arg0, %c0_i32 : i32, i32
  }
  func.func @transform_2(%arg0: i32) -> (i32, i32) {
    %c0_i32 = arith.constant 0 : i32
    %c0_i32_0 = arith.constant 0 : i32
    %c0_i32_1 = arith.constant 0 : i32
    return %c0_i32, %c0_i32_0 : i32, i32
  }
  func.func @transform_3(%arg0: i32) -> (i32, i32) {
    %c0_i32 = arith.constant 0 : i32
    %c0_i32_0 = arith.constant 0 : i32
    return %arg0, %c0_i32 : i32, i32
  }
  func.func @transform_4(%arg0: i32) -> (i32, i32) {
    %c0_i32 = arith.constant 0 : i32
    %c0_i32_0 = arith.constant 0 : i32
    return %arg0, %c0_i32 : i32, i32
  }
}

</mosaic_0001>

<llo_original>
// kernel: tpu_custom_call.1
$region0: #{tpu_custom_call.1}
  #allocation0 [shape = 'u32[]', space=smem, size = 0x4, offset = 0x4, fixed_abs, tag = 'smem constant byte address 0x4 - core index']
  #allocation1 [shape = 'u32[144,128]{1,0:T(1,128)}', space=vmem, size = 0x12000, scoped, tag = 'internal scratch']
  #allocation2 [shape = 'f32[1]{0:T(128)S(6)}', space=smem, size = 0x200, scoped, tag = 'scoped memory for tpu_custom_call.1']
  %s0 = inlined_call_operand.<no memory space> [shape: f32[1], index: 0, kind: input, shape index: {}]
  %s1 = inlined_call_operand.vmem [shape: bf16[128,80], index: 1, kind: input, shape index: {}]
  %s2 = inlined_call_operand.vmem [shape: bf16[80,64], index: 2, kind: input, shape index: {}]
  %s3 = inlined_call_operand.vmem [shape: f32[128,64], index: 3, kind: input, shape index: {}]
  %s4 = inlined_call_operand.vmem [shape: bf16[128,64], index: 4, kind: output, shape index: {}]
  %s5 = sld [smem:[#allocation0]]
  $region26: #{tpu_custom_call.1} parent=0
    _
  %s7 = ssub.s32 1, %s5
  %s8 = scalar_select 0, %s7, %s5
  %9 = sst [smem:[#allocation2]] %s0
  // Predicated region
  $region2: #{tpu_custom_call.1} parent=0 // pred_check
    _
  $region3: #{tpu_custom_call.1} parent=0 // pred_check_branch
    %11 = sbr.rel (0) target = $region5
  $region4: #{tpu_custom_call.1} parent=0 // pred_region
    _
  $region5: #{tpu_custom_call.1} parent=0 // pred_fallthru
    _
  // Predicated region
  $region6: #{tpu_custom_call.1} parent=0 // pred_check
    _
  $region7: #{tpu_custom_call.1} parent=0 // pred_check_branch
    %13 = sbr.rel (0) target = $region9
  $region8: #{tpu_custom_call.1} parent=0 // pred_region
    _
  $region9: #{tpu_custom_call.1} parent=0 // pred_fallthru
    _
  // Predicated region
  $region10: #{tpu_custom_call.1} parent=0 // pred_check
    _
  $region11: #{tpu_custom_call.1} parent=0 // pred_check_branch
    %15 = sbr.rel (0) target = $region13
  $region12: #{tpu_custom_call.1} parent=0 // pred_region
    _
  $region13: #{tpu_custom_call.1} parent=0 // pred_fallthru
    _
  // Predicated region
  $region14: #{tpu_custom_call.1} parent=0 // pred_check
    _
  $region15: #{tpu_custom_call.1} parent=0 // pred_check_branch
    %17 = sbr.rel (0) target = $region17
  $region16: #{tpu_custom_call.1} parent=0 // pred_region
    _
  $region17: #{tpu_custom_call.1} parent=0 // pred_fallthru
    _
  %v19 = vld [vmem:[%s1] sm:$0xf]
  %v20 = vld [vmem:[%s1 + $0x4] sm:$0xf]
  %v21 = vld [vmem:[%s1 + $0x8] sm:$0xf]
  %v22 = vld [vmem:[%s1 + $0xc] sm:$0xf]
  %v23 = vld [vmem:[%s1 + $0x10] sm:$0xf]
  %v24 = vld [vmem:[%s1 + $0x14] sm:$0xf]
  %v25 = vld [vmem:[%s1 + $0x18] sm:$0xf]
  %v26 = vld [vmem:[%s1 + $0x1c] sm:$0xf]
  %v27 = vld [vmem:[%s1 + $0x20] sm:$0xf]
  %v28 = vld [vmem:[%s1 + $0x24] sm:$0xf]
  %v29 = vld [vmem:[%s1 + $0x28] sm:$0xf]
  %v30 = vld [vmem:[%s1 + $0x2c] sm:$0xf]
  %v31 = vld [vmem:[%s1 + $0x30] sm:$0xf]
  %v32 = vld [vmem:[%s1 + $0x34] sm:$0xf]
  %v33 = vld [vmem:[%s1 + $0x38] sm:$0xf]
  %v34 = vld [vmem:[%s1 + $0x3c] sm:$0xf]
  %v35 = vld [vmem:[%s2] sm:$0xf]
  %v36 = vld [vmem:[%s2 + $0x4] sm:$0xf]
  %v37 = vld [vmem:[%s2 + $0x8] sm:$0xf]
  %v38 = vld [vmem:[%s2 + $0xc] sm:$0xf]
  %v39 = vld [vmem:[%s2 + $0x10] sm:$0xf]
  %v40 = vld [vmem:[%s2 + $0x14] sm:$0xf]
  %v41 = vld [vmem:[%s2 + $0x18] sm:$0xf]
  %v42 = vld [vmem:[%s2 + $0x1c] sm:$0xf]
  %v43 = vld [vmem:[%s2 + $0x20] sm:$0xf]
  %v44 = vld [vmem:[%s2 + $0x24] sm:$0xf]
  %v61 = vunpack.c.l.b16 %v19
  %v62 = vunpack.c.l.b16 %v20
  %v63 = vunpack.c.l.b16 %v21
  %v64 = vunpack.c.l.b16 %v22
  %v65 = vunpack.c.l.b16 %v23
  %v66 = vunpack.c.l.b16 %v24
  %v67 = vunpack.c.l.b16 %v25
  %v68 = vunpack.c.l.b16 %v26
  %v69 = vunpack.c.l.b16 %v27
  %v70 = vunpack.c.l.b16 %v28
  %v71 = vunpack.c.l.b16 %v29
  %v72 = vunpack.c.l.b16 %v30
  %v73 = vunpack.c.l.b16 %v31
  %v74 = vunpack.c.l.b16 %v32
  %v75 = vunpack.c.l.b16 %v33
  %v76 = vunpack.c.l.b16 %v34
  %v77 = vpack.c.b16 %v62, %v61
  %v78 = vpack.c.b16 %v64, %v63
  %v79 = vpack.c.b16 %v66, %v65
  %v80 = vpack.c.b16 %v68, %v67
  %v81 = vpack.c.b16 %v70, %v69
  %v82 = vpack.c.b16 %v72, %v71
  %v83 = vpack.c.b16 %v74, %v73
  %v84 = vpack.c.b16 %v76, %v75
  %v95 = vunpack.c.l.b16 %v35
  %v96 = vunpack.c.l.b16 %v36
  %v97 = vunpack.c.l.b16 %v37
  %v98 = vunpack.c.l.b16 %v38
  %v99 = vunpack.c.l.b16 %v39
  %v100 = vunpack.c.l.b16 %v40
  %v101 = vunpack.c.l.b16 %v41
  %v102 = vunpack.c.l.b16 %v42
  %v103 = vunpack.c.l.b16 %v43
  %v104 = vunpack.c.l.b16 %v44
  %v105 = vpack.c.b16 %v96, %v95
  %v106 = vpack.c.b16 %v98, %v97
  %v107 = vpack.c.b16 %v100, %v99
  %v108 = vpack.c.b16 %v102, %v101
  %v109 = vpack.c.b16 %v104, %v103
  %vm115 = vcmask 654336
  %v117 = vsel %vm115, %v77, 0
  %v120 = vsel %vm115, %v78, 0
  %v123 = vsel %vm115, %v79, 0
  %v126 = vsel %vm115, %v80, 0
  %v129 = vsel %vm115, %v81, 0
  %v132 = vsel %vm115, %v82, 0
  %v135 = vsel %vm115, %v83, 0
  %v138 = vsel %vm115, %v84, 0
  %140 = vmatprep.subr.bf16.mxu0 0
  %141 = vmatpush1.bf16.msra.mxu0 %v105
  %142 = vmatprep.subr.bf16.mxu0 0
  %143 = vmatpush1.bf16.msra.mxu0 %v106
  %144 = vmatprep.subr.bf16.mxu0 0
  %145 = vmatpush1.bf16.msra.mxu0 %v107
  %146 = vmatprep.subr.bf16.mxu0 0
  %147 = vmatpush1.bf16.msra.mxu0 %v108
  %148 = vmatprep.subr.bf16.mxu0 0
  %149 = vmatpush1.bf16.msra.mxu0 %v109
  %150 = vmatprep.subr.bf16.mxu0 0
  %151 = vmatpush1.bf16.msra.mxu0 0
  %152 = vmatprep.subr.bf16.mxu0 0
  %153 = vmatpush1.bf16.msra.mxu0 0
  %154 = vmatprep.subr.bf16.mxu0 0
  %155 = vmatpush1.bf16.msra.mxu0 0
  %156 = vmatprep.subr.bf16.mxu0 0
  %157 = vmatpush1.bf16.msra.mxu0 0
  %158 = vmatprep.subr.bf16.mxu0 0
  %159 = vmatpush1.bf16.msra.mxu0 0
  %160 = vmatprep.subr.bf16.mxu0 0
  %161 = vmatpush1.bf16.msra.mxu0 0
  %162 = vmatprep.subr.bf16.mxu0 0
  %163 = vmatpush1.bf16.msra.mxu0 0
  %164 = vmatprep.subr.bf16.mxu0 0
  %165 = vmatpush1.bf16.msra.mxu0 0
  %166 = vmatprep.subr.bf16.mxu0 0
  %167 = vmatpush1.bf16.msra.mxu0 0
  %168 = vmatprep.subr.bf16.mxu0 0
  %169 = vmatpush1.bf16.msra.mxu0 0
  %170 = vmatprep.subr.bf16.mxu0 0
  %171 = vmatpush1.bf16.msra.mxu0 0
  %172 = vmatprep.mubr.bf16.mxu0 0
  %173 = vmatmul.mubr.bf16.gmra.mrb[0].mxu0 %v117
  %v174 = vpop.f32.mrb[0].mxu0
  %v175 = vadd.f32 0.0, %v174
  %v176 = vpop.f32.mrb[0].mxu0
  %v177 = vpop.f32.mrb[0].mxu0
  %v178 = vadd.f32 0.0, %v177
  %v179 = vpop.f32.mrb[0].mxu0
  %180 = vmatprep.mubr.bf16.mxu0 0
  %181 = vmatmul.mubr.bf16.gmra.mrb[0].mxu0 %v120
  %v182 = vpop.f32.mrb[0].mxu0
  %v183 = vadd.f32 0.0, %v182
  %v184 = vpop.f32.mrb[0].mxu0
  %v185 = vpop.f32.mrb[0].mxu0
  %v186 = vadd.f32 0.0, %v185
  %v187 = vpop.f32.mrb[0].mxu0
  %188 = vmatprep.mubr.bf16.mxu0 0
  %189 = vmatmul.mubr.bf16.gmra.mrb[0].mxu0 %v123
  %v190 = vpop.f32.mrb[0].mxu0
  %v191 = vadd.f32 0.0, %v190
  %v192 = vpop.f32.mrb[0].mxu0
  %v193 = vpop.f32.mrb[0].mxu0
  %v194 = vadd.f32 0.0, %v193
  %v195 = vpop.f32.mrb[0].mxu0
  %196 = vmatprep.mubr.bf16.mxu0 0
  %197 = vmatmul.mubr.bf16.gmra.mrb[0].mxu0 %v126
  %v198 = vpop.f32.mrb[0].mxu0
  %v199 = vadd.f32 0.0, %v198
  %v200 = vpop.f32.mrb[0].mxu0
  %v201 = vpop.f32.mrb[0].mxu0
  %v202 = vadd.f32 0.0, %v201
  %v203 = vpop.f32.mrb[0].mxu0
  %204 = vmatprep.mubr.bf16.mxu0 0
  %205 = vmatmul.mubr.bf16.gmra.mrb[0].mxu0 %v129
  %v206 = vpop.f32.mrb[0].mxu0
  %v207 = vadd.f32 0.0, %v206
  %v208 = vpop.f32.mrb[0].mxu0
  %v209 = vpop.f32.mrb[0].mxu0
  %v210 = vadd.f32 0.0, %v209
  %v211 = vpop.f32.mrb[0].mxu0
  %212 = vmatprep.mubr.bf16.mxu0 0
  %213 = vmatmul.mubr.bf16.gmra.mrb[0].mxu0 %v132
  %v214 = vpop.f32.mrb[0].mxu0
  %v215 = vadd.f32 0.0, %v214
  %v216 = vpop.f32.mrb[0].mxu0
  %v217 = vpop.f32.mrb[0].mxu0
  %v218 = vadd.f32 0.0, %v217
  %v219 = vpop.f32.mrb[0].mxu0
  %220 = vmatprep.mubr.bf16.mxu0 0
  %221 = vmatmul.mubr.bf16.gmra.mrb[0].mxu0 %v135
  %v222 = vpop.f32.mrb[0].mxu0
  %v223 = vadd.f32 0.0, %v222
  %v224 = vpop.f32.mrb[0].mxu0
  %v225 = vpop.f32.mrb[0].mxu0
  %v226 = vadd.f32 0.0, %v225
  %v227 = vpop.f32.mrb[0].mxu0
  %228 = vmatprep.mubr.bf16.mxu0 0
  %229 = vmatmul.mubr.bf16.gmra.mrb[0].mxu0 %v138
  %v230 = vpop.f32.mrb[0].mxu0
  %v231 = vadd.f32 0.0, %v230
  %v232 = vpop.f32.mrb[0].mxu0
  %v233 = vpop.f32.mrb[0].mxu0
  %v234 = vadd.f32 0.0, %v233
  %v235 = vpop.f32.mrb[0].mxu0
  %236 = vdwg.mxu0
  %v237 = vld [vmem:[%s3] sm:$0xff]
  %v238 = vld [vmem:[%s3 + $0x8] sm:$0xff]
  %v239 = vld [vmem:[%s3 + $0x10] sm:$0xff]
  %v240 = vld [vmem:[%s3 + $0x18] sm:$0xff]
  %v241 = vld [vmem:[%s3 + $0x20] sm:$0xff]
  %v242 = vld [vmem:[%s3 + $0x28] sm:$0xff]
  %v243 = vld [vmem:[%s3 + $0x30] sm:$0xff]
  %v244 = vld [vmem:[%s3 + $0x38] sm:$0xff]
  %v245 = vld [vmem:[%s3 + $0x40] sm:$0xff]
  %v246 = vld [vmem:[%s3 + $0x48] sm:$0xff]
  %v247 = vld [vmem:[%s3 + $0x50] sm:$0xff]
  %v248 = vld [vmem:[%s3 + $0x58] sm:$0xff]
  %v249 = vld [vmem:[%s3 + $0x60] sm:$0xff]
  %v250 = vld [vmem:[%s3 + $0x68] sm:$0xff]
  %v251 = vld [vmem:[%s3 + $0x70] sm:$0xff]
  %v252 = vld [vmem:[%s3 + $0x78] sm:$0xff]
  %s253 = sld [smem:[#allocation2]]
  %v254 = vstv %s253
  %v255 = vmul.f32 %v254, %v175
  %v256 = vmul.f32 %v254, %v178
  %v257 = vmul.f32 %v254, %v183
  %v258 = vmul.f32 %v254, %v186
  %v259 = vmul.f32 %v254, %v191
  %v260 = vmul.f32 %v254, %v194
  %v261 = vmul.f32 %v254, %v199
  %v262 = vmul.f32 %v254, %v202
  %v263 = vmul.f32 %v254, %v207
  %v264 = vmul.f32 %v254, %v210
  %v265 = vmul.f32 %v254, %v215
  %v266 = vmul.f32 %v254, %v218
  %v267 = vmul.f32 %v254, %v223
  %v268 = vmul.f32 %v254, %v226
  %v269 = vmul.f32 %v254, %v231
  %v270 = vmul.f32 %v254, %v234
  %v271 = vadd.f32 %v237, %v255
  %v272 = vadd.f32 %v238, %v256
  %v273 = vadd.f32 %v239, %v257
  %v274 = vadd.f32 %v240, %v258
  %v275 = vadd.f32 %v241, %v259
  %v276 = vadd.f32 %v242, %v260
  %v277 = vadd.f32 %v243, %v261
  %v278 = vadd.f32 %v244, %v262
  %v279 = vadd.f32 %v245, %v263
  %v280 = vadd.f32 %v246, %v264
  %v281 = vadd.f32 %v247, %v265
  %v282 = vadd.f32 %v248, %v266
  %v283 = vadd.f32 %v249, %v267
  %v284 = vadd.f32 %v250, %v268
  %v285 = vadd.f32 %v251, %v269
  %v286 = vadd.f32 %v252, %v270
  %v287 = vpack.c.bf16 %v272, %v271
  %v288 = vpack.c.bf16 %v274, %v273
  %v289 = vpack.c.bf16 %v276, %v275
  %v290 = vpack.c.bf16 %v278, %v277
  %v291 = vpack.c.bf16 %v280, %v279
  %v292 = vpack.c.bf16 %v282, %v281
  %v293 = vpack.c.bf16 %v284, %v283
  %v294 = vpack.c.bf16 %v286, %v285
  %v303 = vunpack.c.l.b16 %v287
  %v304 = vunpack.c.h.b16 %v287
  %v305 = vunpack.c.l.b16 %v288
  %v306 = vunpack.c.h.b16 %v288
  %v307 = vunpack.c.l.b16 %v289
  %v308 = vunpack.c.h.b16 %v289
  %v309 = vunpack.c.l.b16 %v290
  %v310 = vunpack.c.h.b16 %v290
  %v311 = vunpack.c.l.b16 %v291
  %v312 = vunpack.c.h.b16 %v291
  %v313 = vunpack.c.l.b16 %v292
  %v314 = vunpack.c.h.b16 %v292
  %v315 = vunpack.c.l.b16 %v293
  %v316 = vunpack.c.h.b16 %v293
  %v317 = vunpack.c.l.b16 %v294
  %v318 = vunpack.c.h.b16 %v294
  %v319 = vpack.c.b16 %v303, %v303
  %v320 = vpack.c.b16 %v304, %v304
  %v321 = vpack.c.b16 %v305, %v305
  %v322 = vpack.c.b16 %v306, %v306
  %v323 = vpack.c.b16 %v307, %v307
  %v324 = vpack.c.b16 %v308, %v308
  %v325 = vpack.c.b16 %v309, %v309
  %v326 = vpack.c.b16 %v310, %v310
  %v327 = vpack.c.b16 %v311, %v311
  %v328 = vpack.c.b16 %v312, %v312
  %v329 = vpack.c.b16 %v313, %v313
  %v330 = vpack.c.b16 %v314, %v314
  %v331 = vpack.c.b16 %v315, %v315
  %v332 = vpack.c.b16 %v316, %v316
  %v333 = vpack.c.b16 %v317, %v317
  %v334 = vpack.c.b16 %v318, %v318
  %vm351 = vcmask 519168
  %352 = vst.msk [vmem:[%s4] sm:$0xf] %vm351, %v319
  %353 = vst.msk [vmem:[%s4 + $0x4] sm:$0xf] %vm351, %v320
  %354 = vst.msk [vmem:[%s4 + $0x8] sm:$0xf] %vm351, %v321
  %355 = vst.msk [vmem:[%s4 + $0xc] sm:$0xf] %vm351, %v322
  %356 = vst.msk [vmem:[%s4 + $0x10] sm:$0xf] %vm351, %v323
  %357 = vst.msk [vmem:[%s4 + $0x14] sm:$0xf] %vm351, %v324
  %358 = vst.msk [vmem:[%s4 + $0x18] sm:$0xf] %vm351, %v325
  %359 = vst.msk [vmem:[%s4 + $0x1c] sm:$0xf] %vm351, %v326
  %360 = vst.msk [vmem:[%s4 + $0x20] sm:$0xf] %vm351, %v327
  %361 = vst.msk [vmem:[%s4 + $0x24] sm:$0xf] %vm351, %v328
  %362 = vst.msk [vmem:[%s4 + $0x28] sm:$0xf] %vm351, %v329
  %363 = vst.msk [vmem:[%s4 + $0x2c] sm:$0xf] %vm351, %v330
  %364 = vst.msk [vmem:[%s4 + $0x30] sm:$0xf] %vm351, %v331
  %365 = vst.msk [vmem:[%s4 + $0x34] sm:$0xf] %vm351, %v332
  %366 = vst.msk [vmem:[%s4 + $0x38] sm:$0xf] %vm351, %v333
  %367 = vst.msk [vmem:[%s4 + $0x3c] sm:$0xf] %vm351, %v334
  // Predicated region
  $region18: #{tpu_custom_call.1} parent=0 // pred_check
    _
  $region19: #{tpu_custom_call.1} parent=0 // pred_check_branch
    %369 = sbr.rel (0) target = $region21
  $region20: #{tpu_custom_call.1} parent=0 // pred_region
    _
  $region21: #{tpu_custom_call.1} parent=0 // pred_fallthru
    _
  // Predicated region
  $region22: #{tpu_custom_call.1} parent=0 // pred_check
    _
  $region23: #{tpu_custom_call.1} parent=0 // pred_check_branch
    %371 = sbr.rel (0) target = $region25
  $region24: #{tpu_custom_call.1} parent=0 // pred_region
    _
  $region25: #{tpu_custom_call.1} parent=0 // pred_fallthru
    _

</llo_original>
